<compile_context>
chip_gen: v5e
topology: v5e:2x2
jax: 0.10.0
libtpu: 0.0.40
codegen_flags: <defaults>
</compile_context>

<pallas_src>
import functools

import jax
import jax.numpy as jnp
from jax import lax
from jax.experimental import pallas as pl
from jax.experimental.pallas import tpu as pltpu

N_MOL = 7                      # O2, N2, H2, CO2, H2O, CH4, NH3
SIGMA_LIKELIHOOD = 0.1
SQRT_2PI = 2.5066282746310002  # sqrt(2*pi)


def _cdiv(a, b):
    return -(-a // b)


def _default_num_partitions():
    """2 TensorCores reachable through a 'parallel' grid axis (v4/v5p, v7x)."""
    try:
        kind = jax.devices()[0].device_kind.lower()
    except Exception:
        return 1
    if any(t in kind for t in ("v4", "v5p", "7x", "v7")):
        return 2
    return 1


# --------------------------------------------------------------------------
# Plain-JAX (B, 7) abundance terms (hoisted out of the Pallas kernel).
# --------------------------------------------------------------------------
def _average_ranks(x):
    """Tie-aware average ranks per row (scipy rankdata 'average'), vectorized."""
    xi = x[:, :, None]                                  # (B, 7, 1)
    xj = x[:, None, :]                                  # (B, 1, 7)
    less = jnp.sum((xj < xi).astype(x.dtype), axis=2)   # (B, 7)
    eq = jnp.sum((xj == xi).astype(x.dtype), axis=2)    # (B, 7)
    return less + (eq + 1.0) * 0.5


def _abundance_loss(pred, unc, real, det):
    """dataLoss + spearmanLoss + atmosphere prior on the small (B, 7) tensors."""
    f32 = jnp.float32
    pred, unc, real, det = (a.astype(f32) for a in (pred, unc, real, det))
    B = pred.shape[0]

    # ---------------- dataLoss = MSELoss(predAbun, realAbun) ----------------
    data_loss = jnp.sum((pred - real) ** 2) / (B * N_MOL)

    # ---------------- spearmanLoss(detectionOutput, predAbun) ---------------
    rd = _average_ranks(det)
    rp = _average_ranks(pred)
    rd_c = rd - jnp.sum(rd, axis=1, keepdims=True) / N_MOL
    rp_c = rp - jnp.sum(rp, axis=1, keepdims=True) / N_MOL
    num = jnp.sum(rd_c * rp_c, axis=1, keepdims=True)
    den2 = (jnp.sum(rd_c ** 2, axis=1, keepdims=True)
            * jnp.sum(rp_c ** 2, axis=1, keepdims=True))
    spearman = num * lax.rsqrt(den2)
    spearman_loss = jnp.sum(1.0 - spearman) / B

    # ---------------- prior (atmosphere classification + Gaussian prior) ----
    cH = jnp.array([[0., 0., 2., 0., 2., 4., 3.]], dtype=f32)
    cC = jnp.array([[0., 0., 0., 1., 0., 1., 0.]], dtype=f32)
    cO = jnp.array([[2., 0., 0., 2., 1., 0., 0.]], dtype=f32)
    cN = jnp.array([[0., 2., 0., 0., 0., 0., 1.]], dtype=f32)
    H = jnp.sum(pred * cH, axis=1, keepdims=True)
    C = jnp.sum(pred * cC, axis=1, keepdims=True)
    O = jnp.sum(pred * cO, axis=1, keepdims=True)
    N = jnp.sum(pred * cN, axis=1, keepdims=True)

    cond_a = H > 2.0 * O + 4.0 * C
    a1_inner = 3.0 * N < H - 2.0 * O - 4.0 * C
    cond_a1 = cond_a & a1_inner
    cond_a2 = cond_a & jnp.logical_not(a1_inner)
    cond_b_raw = 2.0 * O > H + 4.0 * C
    cond_b = jnp.logical_not(cond_a) & cond_b_raw
    cond_c = (jnp.logical_not(cond_a) & jnp.logical_not(cond_b_raw)
              & (jnp.abs(H + C + O + N - 1.0) < 0.001))
    classified = cond_a | cond_b | cond_c                # (B, 1)

    # Expected values occupy "columns" 0..3 (dict-insertion order, matching the
    # PyTorch reference's list indexing); columns 4..6 are always 0.
    col = lax.broadcasted_iota(jnp.int32, (B, N_MOL), 1)
    zeros_b7 = jnp.zeros_like(pred)

    def expand(vals):                      # 4 x (B,1) -> (B,7) with zeros in 4..6
        out = zeros_b7
        for j, v in enumerate(vals):
            out = jnp.where(col == j, v, out)
        return out

    d_a1 = H - N - 2.0 * C
    a1 = expand([2.0 * O / d_a1, 2.0 * N / d_a1, 2.0 * C / d_a1,
                 (H - 2.0 * O - 4.0 * C - 3.0 * N) / d_a1])
    d_a2 = H + 2.0 * C + 3.0 * N + 4.0 * O
    a2 = expand([6.0 * O / d_a2, (2.0 * H - 8.0 * C - 4.0 * O) / d_a2,
                 6.0 * C / d_a2, (3.0 * N + 4.0 * C + 2.0 * O - H) / d_a2])
    d_b = H + 2.0 * O + 2.0 * N
    bb = expand([2.0 * H / d_b, 2.0 * N / d_b, 4.0 * C / d_b,
                 (2.0 * O - H - 4.0 * C) / d_b])
    d1 = H + 2.0 * O + 2.0 * N
    d2 = 2.0 * H + 4.0 * O + 4.0 * N
    cc = expand([(H + 2.0 * O - 4.0 * C) / d1, (H - 2.0 * O + 4.0 * C) / d2,
                 (2.0 * O + 4.0 * C - H) / d2, 2.0 * N / d1])

    mu = jnp.where(cond_a1, a1,
         jnp.where(cond_a2, a2,
         jnp.where(cond_b, bb,
         jnp.where(cond_c, cc, zeros_b7))))               # (B, 7)

    quad = jnp.sum((pred - mu) ** 2 / (2.0 * unc * unc), axis=1, keepdims=True)
    log_term = jnp.sum(jnp.log(SQRT_2PI * unc), axis=1, keepdims=True)
    sample_loss = jnp.where(classified, log_term + quad, jnp.zeros_like(H))
    prior = jnp.sum(sample_loss) / B

    return data_loss + spearman_loss + prior


# --------------------------------------------------------------------------
# Pallas kernel: streaming sum-of-squared transmittance error.
# --------------------------------------------------------------------------
def _sq_err_kernel(yr_ref, ys_ref, out_ref, acc_ref, *, nll_scale, rows,
                   tile_rows, blocks_per_par, n_blocks, mask_rows, gate_blocks):
    p = pl.program_id(0)          # 'parallel' partition (2 TCs on v4/v5p/v7x)
    b = pl.program_id(1)          # sequential streaming step within partition

    @pl.when(b == 0)
    def _init():
        acc_ref[...] = jnp.zeros_like(acc_ref)

    blk = p * blocks_per_par + b  # global block index along rows

    def _accumulate():
        d = yr_ref[...].astype(jnp.float32) - ys_ref[...].astype(jnp.float32)
        if mask_rows:
            # Ragged-tail block: rows past `rows` contain garbage -> zero them.
            rid = blk * tile_rows + lax.broadcasted_iota(jnp.int32, d.shape, 0)
            d = jnp.where(rid < rows, d, 0.0)
        acc_ref[...] += d * d     # pure VPU; single reduce happens at the end

    if gate_blocks:
        # Phantom iterations (uneven block split across partitions) do nothing.
        pl.when(blk < n_blocks)(_accumulate)
    else:
        _accumulate()

    @pl.when(b == pl.num_programs(1) - 1)
    def _finalize():
        total = jnp.sum(acc_ref[...]) * jnp.float32(nll_scale)
        out_ref[...] = jnp.broadcast_to(total, out_ref.shape).astype(jnp.float32)


def _transmittance_nll(y_real, y_sim, *, max_tile_bytes=4 << 20,
                       num_partitions=None):
    """mean_batch( mean_{R,W}((yReal-ySim)^2) / (2 sigma^2) ) via Pallas."""
    B, R, W = y_real.shape
    rows = B * R
    yr = y_real.reshape(rows, W)          # contiguous reshape, native dtype
    ys = y_sim.reshape(rows, W)

    itemsize = jnp.dtype(yr.dtype).itemsize
    bytes_per_row = max(1, W * itemsize)

    # Row tile: as large as the per-buffer budget allows (multiple of 8), or a
    # single full-extent block when the whole slab fits / rows are tiny.
    if rows * bytes_per_row <= max_tile_bytes or rows < 8:
        tile_rows = rows                  # block dim == full array dim: legal
    else:
        cap = max(8, (max_tile_bytes // bytes_per_row) // 8 * 8)
        tile_rows = min(cap, rows // 8 * 8)
        if rows % tile_rows != 0:
            # Prefer an exact divisor (multiple of 8) to skip the tail mask.
            t = tile_rows
            lo = max(8, tile_rows // 2)
            while t >= lo:
                if rows % t == 0:
                    tile_rows = t
                    break
                t -= 8

    n_blocks = _cdiv(rows, tile_rows)
    mask_rows = (n_blocks * tile_rows != rows)

    n_par = (num_partitions if num_partitions is not None
             else _default_num_partitions())
    n_par = max(1, min(n_par, n_blocks))
    bpp = _cdiv(n_blocks, n_par)
    gate_blocks = (n_par * bpp != n_blocks)

    # sum(sq) * nll_scale == batch-mean of per-sample mean_{R,W} / (2 sigma^2).
    nll_scale = 1.0 / (float(R) * float(W) * float(B)
                       * 2.0 * SIGMA_LIKELIHOOD ** 2)

    if gate_blocks:
        def stream_idx(p, b):
            return (jnp.minimum(p * bpp + b, n_blocks - 1), 0)
    else:
        def stream_idx(p, b):
            return (p * bpp + b, 0)

    kernel = functools.partial(
        _sq_err_kernel, nll_scale=nll_scale, rows=rows, tile_rows=tile_rows,
        blocks_per_par=bpp, n_blocks=n_blocks,
        mask_rows=mask_rows, gate_blocks=gate_blocks)

    cost = pl.CostEstimate(
        flops=int(3 * rows * W),
        transcendentals=0,
        bytes_accessed=int(2 * rows * W * itemsize + n_par * 8 * 128 * 4))

    partials = pl.pallas_call(
        kernel,
        out_shape=jax.ShapeDtypeStruct((n_par, 8, 128), jnp.float32),
        grid_spec=pltpu.PrefetchScalarGridSpec(
            num_scalar_prefetch=0,
            grid=(n_par, bpp),
            in_specs=[pl.BlockSpec((tile_rows, W), stream_idx),
                      pl.BlockSpec((tile_rows, W), stream_idx)],
            out_specs=pl.BlockSpec((1, 8, 128), lambda p, b: (p, 0, 0)),
            scratch_shapes=[pltpu.VMEM((tile_rows, W), jnp.float32)]),
        compiler_params=pltpu.CompilerParams(
            dimension_semantics=("parallel", "arbitrary"),
            vmem_limit_bytes=40 * 1024 * 1024),
        cost_estimate=cost,
    )(yr, ys)

    return jnp.sum(partials[:, 0, 0])


def custom_loss(pred_abun, uncertainty, real_abun, detection_output,
                input_transmittance, simulated_transmittance,
                *, max_tile_bytes=4 << 20, num_partitions=None):
    """Pallas equivalent of customLoss.forward (scalar loss)."""
    nll = _transmittance_nll(input_transmittance, simulated_transmittance,
                             max_tile_bytes=max_tile_bytes,
                             num_partitions=num_partitions)
    abun = _abundance_loss(pred_abun, uncertainty, real_abun, detection_output)
    return nll + abun


# --------------------------------------------------------------------------
# Pure-JAX reference mirroring the PyTorch math (loop/slice style) for checks.
# --------------------------------------------------------------------------
def _reference_loss(pred, unc, real, det, y_real, y_sim):
    f32 = jnp.float32
    pred, unc, real, det = (a.astype(f32) for a in (pred, unc, real, det))
    y_real, y_sim = y_real.astype(f32), y_sim.astype(f32)
    B = pred.shape[0]

    def ranks(x):
        less = jnp.zeros_like(x)
        eq = jnp.zeros_like(x)
        for k in range(x.shape[1]):
            xk = x[:, k:k + 1]
            less = less + (xk < x).astype(x.dtype)
            eq = eq + (xk == x).astype(x.dtype)
        return less + (eq + 1.0) * 0.5

    data_loss = jnp.mean((pred - real) ** 2)

    rd, rp = ranks(det), ranks(pred)
    rd_c = rd - jnp.mean(rd, axis=1, keepdims=True)
    rp_c = rp - jnp.mean(rp, axis=1, keepdims=True)
    num = jnp.sum(rd_c * rp_c, axis=1)
    den = jnp.sqrt(jnp.sum(rd_c ** 2, axis=1) * jnp.sum(rp_c ** 2, axis=1))
    spearman_loss = jnp.mean(1.0 - num / den)

    mse = jnp.mean((y_real - y_sim) ** 2, axis=(1, 2))
    nll_mean = jnp.mean(mse / (2.0 * SIGMA_LIKELIHOOD ** 2))

    o2, n2, h2 = pred[:, 0:1], pred[:, 1:2], pred[:, 2:3]
    co2, h2o, ch4, nh3 = pred[:, 3:4], pred[:, 4:5], pred[:, 5:6], pred[:, 6:7]
    H = 2 * h2 + 2 * h2o + 3 * nh3 + 4 * ch4
    C = co2 + ch4
    O = 2 * o2 + 2 * co2 + h2o
    N = 2 * n2 + nh3

    cond_a = H > 2 * O + 4 * C
    a1_inner = 3 * N < H - 2 * O - 4 * C
    cond_a1 = cond_a & a1_inner
    cond_a2 = cond_a & ~a1_inner
    cond_b_raw = 2 * O > H + 4 * C
    cond_b = ~cond_a & cond_b_raw
    cond_c = ~cond_a & ~cond_b_raw & (jnp.abs(H + C + O + N - 1.0) < 0.001)
    classified = cond_a | cond_b | cond_c

    d_a1 = H - N - 2 * C
    a1 = [2 * O / d_a1, 2 * N / d_a1, 2 * C / d_a1,
          (H - 2 * O - 4 * C - 3 * N) / d_a1]
    d_a2 = H + 2 * C + 3 * N + 4 * O
    a2 = [6 * O / d_a2, (2 * H - 8 * C - 4 * O) / d_a2, 6 * C / d_a2,
          (3 * N + 4 * C + 2 * O - H) / d_a2]
    d_b = H + 2 * O + 2 * N
    bb = [2 * H / d_b, 2 * N / d_b, 4 * C / d_b, (2 * O - H - 4 * C) / d_b]
    d1 = H + 2 * O + 2 * N
    d2 = 2 * H + 4 * O + 4 * N
    cc = [(H + 2 * O - 4 * C) / d1, (H - 2 * O + 4 * C) / d2,
          (2 * O + 4 * C - H) / d2, 2 * N / d1]

    zeros = jnp.zeros_like(H)
    quad = jnp.zeros_like(H)
    for j in range(4):
        mu_j = jnp.where(cond_a1, a1[j],
               jnp.where(cond_a2, a2[j],
               jnp.where(cond_b, bb[j],
               jnp.where(cond_c, cc[j], zeros))))
        quad = quad + (pred[:, j:j + 1] - mu_j) ** 2 / (2.0 * unc[:, j:j + 1] ** 2)
    for j in range(4, N_MOL):
        quad = quad + pred[:, j:j + 1] ** 2 / (2.0 * unc[:, j:j + 1] ** 2)
    log_term = jnp.sum(jnp.log(SQRT_2PI * unc), axis=1, keepdims=True)
    prior = jnp.sum(jnp.where(classified, log_term + quad, zeros)) / B

    return nll_mean + prior + data_loss + spearman_loss


if __name__ == "__main__":
    key = jax.random.PRNGKey(0)

    def make_inputs(k, B, R, W):
        k1, k2, k3, k4, k5, k6 = jax.random.split(k, 6)
        pred = jax.nn.softmax(jax.random.normal(k1, (B, N_MOL)), axis=-1)
        real = jax.nn.softmax(jax.random.normal(k2, (B, N_MOL)), axis=-1)
        unc = jnp.abs(jax.random.normal(k3, (B, N_MOL))) * 0.1 + 0.05
        det = jax.random.normal(k4, (B, N_MOL))
        y_real = jax.random.uniform(k5, (B, R, W), dtype=jnp.float32)
        # TODO(synk): stand-in for the PSG-simulated transmittance.
        y_sim = jax.random.uniform(k6, (B, R, W), dtype=jnp.float32)
        return pred, unc, real, det, y_real, y_sim

    k_a, k_b, k_c = jax.random.split(key, 3)

    def check(args, ref_args=None, **kw):
        out = jax.block_until_ready(custom_loss(*args, **kw))
        ref = jax.block_until_ready(_reference_loss(*(ref_args or args)))
        assert jnp.isfinite(out), "kernel produced non-finite loss"
        assert jnp.allclose(out, ref, rtol=1e-3, atol=1e-4), (out, ref)
        return out

    # Small shapes implied by the module: batch=2, rows=4, wavelengths=16.
    args_small = make_inputs(k_a, 2, 4, 16)
    check(args_small)

    # Larger, ragged case (rows=380, W=200): multi-block streaming + in-kernel
    # tail masking; also force a 2-way split to exercise the phantom-block gate.
    args_big = make_inputs(k_b, 4, 95, 200)
    check(args_big, max_tile_bytes=64 * 1024)
    check(args_big, max_tile_bytes=64 * 1024, num_partitions=2)

    # Evenly-divisible multi-block, 2-way split (no masking, no gating).
    args_even = make_inputs(k_c, 2, 64, 128)
    check(args_even, max_tile_bytes=16 * 1024, num_partitions=2)

    print("KERNEL_OK")
</pallas_src>

<mosaic_0001>
module attributes {stable_mosaic.version = 11 : i64} {
  func.func @_sq_err_kernel(%arg0: i32, %arg1: i32, %arg2: memref<8x16xf32, #tpu.memory_space<vmem>>, %arg3: memref<8x16xf32, #tpu.memory_space<vmem>>, %arg4: memref<1x8x128xf32, #tpu.memory_space<vmem>>, %arg5: memref<8x16xf32, #tpu.memory_space<vmem>>) attributes {dimension_semantics = [#tpu.dimension_semantics<parallel>, #tpu.dimension_semantics<arbitrary>], iteration_bounds = array<i64: 1, 1>, scalar_prefetch = 0 : i64, scratch_operands = 1 : i64, tpu.core_type = #tpu.core_type<tc>, window_params = [{transform_indices = @transform_0, window_bounds = array<i64: 8, 16>}, {transform_indices = @transform_1, window_bounds = array<i64: 8, 16>}, {transform_indices = @transform_2, window_bounds = array<i64: 1, 8, 128>}]} {
    %c0_i32 = arith.constant 0 : i32
    %0 = arith.cmpi eq, %arg1, %c0_i32 : i32
    %1 = arith.extui %0 : i1 to i32
    %c0_i32_0 = arith.constant 0 : i32
    %2 = arith.cmpi ne, %1, %c0_i32_0 : i32
    scf.if %2 {
      %cst = arith.constant 0.000000e+00 : f32
      %13 = vector.broadcast %cst : f32 to vector<8x16xf32>
      %c0_10 = arith.constant 0 : index
      %c0_11 = arith.constant 0 : index
      %14 = vector.load %arg5[%c0_10, %c0_11] : memref<8x16xf32, #tpu.memory_space<vmem>>, vector<8x16xf32>
      tpu.vector_store %arg5[%c0_10, %c0_11], %13 {strides = array<i32>} : memref<8x16xf32, #tpu.memory_space<vmem>>, vector<8x16xf32>,
    } else {
    }
    %c0 = arith.constant 0 : index
    %c0_1 = arith.constant 0 : index
    %3 = vector.load %arg2[%c0, %c0_1] : memref<8x16xf32, #tpu.memory_space<vmem>>, vector<8x16xf32>
    %c0_2 = arith.constant 0 : index
    %c0_3 = arith.constant 0 : index
    %4 = vector.load %arg3[%c0_2, %c0_3] : memref<8x16xf32, #tpu.memory_space<vmem>>, vector<8x16xf32>
    %5 = arith.subf %3, %4 : vector<8x16xf32>
    %c0_4 = arith.constant 0 : index
    %c0_5 = arith.constant 0 : index
    %6 = vector.load %arg5[%c0_4, %c0_5] : memref<8x16xf32, #tpu.memory_space<vmem>>, vector<8x16xf32>
    %7 = arith.mulf %5, %5 : vector<8x16xf32>
    %8 = arith.addf %6, %7 : vector<8x16xf32>
    %c0_6 = arith.constant 0 : index
    %c0_7 = arith.constant 0 : index
    %9 = vector.load %arg5[%c0_6, %c0_7] : memref<8x16xf32, #tpu.memory_space<vmem>>, vector<8x16xf32>
    tpu.vector_store %arg5[%c0_6, %c0_7], %8 {strides = array<i32>} : memref<8x16xf32, #tpu.memory_space<vmem>>, vector<8x16xf32>,
    %c0_i32_8 = arith.constant 0 : i32
    %10 = arith.cmpi eq, %arg1, %c0_i32_8 : i32
    %11 = arith.extui %10 : i1 to i32
    %c0_i32_9 = arith.constant 0 : i32
    %12 = arith.cmpi ne, %11, %c0_i32_9 : i32
    scf.if %12 {
      %c0_10 = arith.constant 0 : index
      %c0_11 = arith.constant 0 : index
      %13 = vector.load %arg5[%c0_10, %c0_11] : memref<8x16xf32, #tpu.memory_space<vmem>>, vector<8x16xf32>
      %14 = vector.shape_cast %13 : vector<8x16xf32> to vector<1x8x16xf32>
      %cst = arith.constant dense<0.000000e+00> : vector<1xf32>
      %15 = vector.multi_reduction <add>, %14, %cst [1, 2] : vector<1x8x16xf32> to vector<1xf32>
      %16 = vector.shape_cast %15 : vector<1xf32> to vector<1x1x1xf32>
      %17 = vector.extract %16[0, 0, 0] : f32 from vector<1x1x1xf32>
      %cst_12 = arith.constant 3.906250e-01 : f32
      %18 = arith.mulf %17, %cst_12 : f32
      %19 = vector.broadcast %18 : f32 to vector<1x8x128xf32>
      %c0_13 = arith.constant 0 : index
      %c0_14 = arith.constant 0 : index
      %c0_15 = arith.constant 0 : index
      %20 = vector.load %arg4[%c0_13, %c0_14, %c0_15] : memref<1x8x128xf32, #tpu.memory_space<vmem>>, vector<1x8x128xf32>
      tpu.vector_store %arg4[%c0_13, %c0_14, %c0_15], %19 {strides = array<i32>} : memref<1x8x128xf32, #tpu.memory_space<vmem>>, vector<1x8x128xf32>,
    } else {
    }
    return
  }
  func.func @transform_0(%arg0: i32, %arg1: i32) -> (i32, i32) {
    %c1_i32 = arith.constant 1 : i32
    %0 = arith.muli %arg0, %c1_i32 : i32
    %1 = arith.addi %0, %arg1 : i32
    %c0_i32 = arith.constant 0 : i32
    %c0_i32_0 = arith.constant 0 : i32
    return %1, %c0_i32 : i32, i32
  }
  func.func @transform_1(%arg0: i32, %arg1: i32) -> (i32, i32) {
    %c1_i32 = arith.constant 1 : i32
    %0 = arith.muli %arg0, %c1_i32 : i32
    %1 = arith.addi %0, %arg1 : i32
    %c0_i32 = arith.constant 0 : i32
    %c0_i32_0 = arith.constant 0 : i32
    return %1, %c0_i32 : i32, i32
  }
  func.func @transform_2(%arg0: i32, %arg1: i32) -> (i32, i32, i32) {
    %c0_i32 = arith.constant 0 : i32
    %c0_i32_0 = arith.constant 0 : i32
    %c0_i32_1 = arith.constant 0 : i32
    return %arg0, %c0_i32, %c0_i32_0 : i32, i32, i32
  }
}

</mosaic_0001>

<llo_original>
// kernel: tpu_custom_call.1
$region0: #{tpu_custom_call.1}
  #allocation0 [shape = 'u32[]', space=smem, size = 0x4, offset = 0x4, fixed_abs, tag = 'smem constant byte address 0x4 - core index']
  #allocation1 [shape = 'u32[72,128]{1,0:T(1,128)}', space=vmem, size = 0x9000, scoped, tag = 'internal scratch']
  #allocation2 [shape = 'f32[8,16]{1,0:T(8,128)}', space=vmem, size = 0x1000, scoped, tag = 'scratch operand']
  %s0 = inlined_call_operand.hbm [shape: f32[8,16], index: 0, kind: input, shape index: {}]
  %s1 = inlined_call_operand.hbm [shape: f32[8,16], index: 1, kind: input, shape index: {}]
  %s2 = inlined_call_operand.hbm [shape: f32[1,8,128], index: 2, kind: output, shape index: {}]
  %s3 = sld [smem:[#allocation0]]
  $region34: #{tpu_custom_call.1} parent=0
    _
  %s5 = ssub.s32 1, %s3
  %s6 = scalar_select 0, %s5, %s3
  $region1: #{tpu_custom_call.1} parent=0
    #allocation3 [shape = 'u8[4096]{0}', space=vmem, size = 0x1000, scoped, tag = 'input window, operand 0, single buffered']
    #allocation4 [shape = 's32[1]{0}', space=sflag, size = 0x4, scoped, tag = 'scoped memory for tpu_custom_call.1']
    #allocation5 [shape = 's32[1]{0}', space=sflag, size = 0x4, scoped, tag = 'scoped memory for tpu_custom_call.1']
    #allocation6 [shape = 'u8[4096]{0}', space=vmem, size = 0x1000, scoped, tag = 'input window, operand 1, single buffered']
    #allocation7 [shape = 's32[1]{0}', space=sflag, size = 0x4, scoped, tag = 'scoped memory for tpu_custom_call.1']
    #allocation8 [shape = 'u8[4096]{0}', space=vmem, size = 0x1000, scoped, tag = 'output window, operand 0, single buffered']
    %7 = vsyncpa [#allocation4], 0
    %8 = vsyncpa [#allocation7], 0
    %9 = vsyncpa [#allocation5], 0
    // Predicated region
    $region2: #{tpu_custom_call.1} parent=1 // pred_check
      _
    $region3: #{tpu_custom_call.1} parent=1 // pred_check_branch
      %11 = sbr.rel (0) target = $region5
    $region4: #{tpu_custom_call.1} parent=1 // pred_region
      %s12 = sadd.s32 0, 0
      %14 = vsyncadd [#allocation4], 0
      %s15 = smul.addr %s12, 8
      %s16 = scalar_lea.hbm %s0, %s15
      %s18 = sshll.u32 %s16, 4
      %s19 = int_to_ptr.hbm [resolvable:$true] %s18
      %s20 = sshll.u32 [#allocation3], 4
      %s21 = int_to_ptr.vmem [resolvable:$true] %s20
      %23 = dma.hbm_to_vmem [thread:$0]  %s19, 128, %s21, [#allocation4]
    $region5: #{tpu_custom_call.1} parent=1 // pred_fallthru
      _
    // Predicated region
    $region6: #{tpu_custom_call.1} parent=1 // pred_check
      _
    $region7: #{tpu_custom_call.1} parent=1 // pred_check_branch
      %25 = sbr.rel (0) target = $region9
    $region8: #{tpu_custom_call.1} parent=1 // pred_region
      %s26 = sadd.s32 0, 0
      %28 = vsyncadd [#allocation7], 0
      %s29 = smul.addr %s26, 8
      %s30 = scalar_lea.hbm %s1, %s29
      %s32 = sshll.u32 %s30, 4
      %s33 = int_to_ptr.hbm [resolvable:$true] %s32
      %s34 = sshll.u32 [#allocation6], 4
      %s35 = int_to_ptr.vmem [resolvable:$true] %s34
      %37 = dma.hbm_to_vmem [thread:$0]  %s33, 128, %s35, [#allocation7]
    $region9: #{tpu_custom_call.1} parent=1 // pred_fallthru
      _
    // Predicated region
    $region10: #{tpu_custom_call.1} parent=1 // pred_check
      _
    $region11: #{tpu_custom_call.1} parent=1 // pred_check_branch
      %39 = sbr.rel (0) target = $region13
    $region12: #{tpu_custom_call.1} parent=1 // pred_region
      %41 = dma.done [#allocation4], 128
    $region13: #{tpu_custom_call.1} parent=1 // pred_fallthru
      _
    // Predicated region
    $region14: #{tpu_custom_call.1} parent=1 // pred_check
      _
    $region15: #{tpu_custom_call.1} parent=1 // pred_check_branch
      %43 = sbr.rel (0) target = $region17
    $region16: #{tpu_custom_call.1} parent=1 // pred_region
      %45 = dma.done [#allocation7], 128
    $region17: #{tpu_custom_call.1} parent=1 // pred_fallthru
      _
    %s46 = sadd.s32 0, 0
    %s47 = sadd.s32 0, 0
    %p48 = scmp.eq.s32.totalorder 0, 0
    // Predicated region
    $region18: #{tpu_custom_call.1} parent=1 // pred_check
      %p49 = pneg %p48
    $region19: #{tpu_custom_call.1} parent=1 // pred_check_branch
      %51 = sbr.rel (%p49) target = $region21
    $region20: #{tpu_custom_call.1} parent=1 // pred_region
      %vm52 = vcmask 130048
      %53 = vst.msk [vmem:[#allocation2] sm:$0xff] %vm52, 0.0
    $region21: #{tpu_custom_call.1} parent=1 // pred_fallthru
      _
    %v54 = vld [vmem:[#allocation3] sm:$0xff]
    %v55 = vld [vmem:[#allocation6] sm:$0xff]
    %v56 = vsub.f32 %v54, %v55
    %v57 = vld [vmem:[#allocation2] sm:$0xff]
    %v58 = vmul.f32 %v56, %v56
    %v59 = vadd.f32 %v57, %v58
    %vm60 = vcmask 130048
    %61 = vst.msk [vmem:[#allocation2] sm:$0xff] %vm60, %v59
    // Predicated region
    $region22: #{tpu_custom_call.1} parent=1 // pred_check
      %p62 = pneg %p48
    $region23: #{tpu_custom_call.1} parent=1 // pred_check_branch
      %64 = sbr.rel (%p62) target = $region25
    $region24: #{tpu_custom_call.1} parent=1 // pred_region
      %v65 = vld [vmem:[#allocation2] sm:$0xff]
      %v66 = vsel %vm60, %v65, 0.0
      %67 = vadd.xlane.f32.xlu0 %v66
      %v68 = vpop.xlane.xlu0 %67
      %v69 = vrot.slane %v68, 4
      %v70 = vadd.f32 %v68, %v69
      %v71 = vrot.slane %v70, 2
      %v72 = vadd.f32 %v70, %v71
      %v73 = vrot.slane %v72, 1
      %v74 = vadd.f32 %v72, %v73
      %s75 = vtos %v74
      %s76 = smul.f32 %s75, 0.390625
      %v77 = vstv %s76
      %78 = vst [vmem:[#allocation8] sm:$0xff] %v77
    $region25: #{tpu_custom_call.1} parent=1 // pred_fallthru
      _
    // Predicated region
    $region26: #{tpu_custom_call.1} parent=1 // pred_check
      _
    $region27: #{tpu_custom_call.1} parent=1 // pred_check_branch
      %80 = sbr.rel (0) target = $region29
    $region28: #{tpu_custom_call.1} parent=1 // pred_region
      %82 = vsyncadd [#allocation5], 0
      %s84 = sshll.u32 [#allocation8], 4
      %s85 = int_to_ptr.vmem [resolvable:$true] %s84
      %s86 = sshll.u32 %s2, 4
      %s87 = int_to_ptr.hbm [resolvable:$true] %s86
      %89 = dma.vmem_to_hbm [thread:$0]  %s85, 128, %s87, [#allocation5]
    $region29: #{tpu_custom_call.1} parent=1 // pred_fallthru
      _
    // Predicated region
    $region30: #{tpu_custom_call.1} parent=1 // pred_check
      _
    $region31: #{tpu_custom_call.1} parent=1 // pred_check_branch
      %91 = sbr.rel (0) target = $region33
    $region32: #{tpu_custom_call.1} parent=1 // pred_region
      %93 = dma.done [#allocation5], 128
    $region33: #{tpu_custom_call.1} parent=1 // pred_fallthru
      _
    %94 = vsyncpa [#allocation4], 1
    %95 = vsyncpa [#allocation7], 1
    %96 = vsyncpa [#allocation5], 1

</llo_original>
